<compile_context>
chip_gen: v6e
topology: v6e:2x2x1
jax: 0.10.0
libtpu: 0.0.40
codegen_flags: <defaults>
</compile_context>

<pallas_src>
import functools

import jax
import jax.numpy as jnp
from jax import lax
from jax.experimental import pallas as pl
from jax.experimental.pallas import tpu as pltpu

# ---------------- configuration (small, consistent with the module) ----------
BATCH = 2
SEQ = 8
INPUT_DIM = 16
EMB_DIM = 32
N_LOOPS = 2
LN_EPS = 1e-5


def _round_up(a, b):
    return (a + b - 1) // b * b


def encoder_kernel(x_ref, we_ref, be_ref, wl_ref, bl_ref, g_ref, b_ref, o_ref,
                   *, n_loops, eps):
    # x_ref:  [TM, INPUT_DIM]            f32 (cast to bf16 here for the MXU)
    # we_ref: [INPUT_DIM, EMB_DIM]       bf16 embedding Linear weight (in, out)
    # be_ref: [1, EMB_DIM]               f32
    # wl_ref: [n_loops, EMB_DIM, EMB_DIM] bf16 per-layer Linear weights (in, out)
    # bl_ref: [n_loops, 1, EMB_DIM]      f32
    # g_ref / b_ref: [1, EMB_DIM]        f32 LayerNorm gamma / beta
    # o_ref:  [TM, EMB_DIM]              f32
    mm_dtype = we_ref.dtype

    # Embedding layer: x @ We + be  (bf16 operands on MXU, f32 accumulator).
    x = x_ref[...].astype(mm_dtype)
    h = jnp.dot(x, we_ref[...], preferred_element_type=jnp.float32) + be_ref[...]

    # N structurally-identical encoder layers: ReLU(h @ Wi + bi).
    for i in range(n_loops):  # n_loops is static -> unrolled at trace time
        h = jnp.dot(h.astype(mm_dtype), wl_ref[i],
                    preferred_element_type=jnp.float32) + bl_ref[i]
        h = jnp.maximum(h, 0.0)

    # LayerNorm over the full (unpadded) feature axis, biased variance, f32.
    inv_d = 1.0 / h.shape[-1]
    mean = jnp.sum(h, axis=-1, keepdims=True) * inv_d
    centered = h - mean
    var = jnp.sum(centered * centered, axis=-1, keepdims=True) * inv_d
    normed = centered * lax.rsqrt(var + eps)
    o_ref[...] = (normed * g_ref[...] + b_ref[...]).astype(o_ref.dtype)


def encoder_forward(x, params, *, tm=1024, compute_dtype=jnp.bfloat16):
    """x: [B, S, INPUT_DIM] -> [B, S, EMB_DIM]"""
    B, S, din = x.shape
    emb = params["we"].shape[1]
    n_loops = params["wl"].shape[0]
    M = B * S
    x2d = x.reshape(M, din)  # native dtype (f32); bf16 cast happens in-kernel

    # Row tile: big for grid-step amortization, multiple of 16 (bf16 sublane
    # packing), but capped at ceil(M/2) so there are >=2 grid steps when M
    # allows (lets the "parallel" axis use both v7x TensorCores).
    tm_cap = max(16, _round_up(pl.cdiv(M, 2), 16))
    tm = max(16, min(_round_up(tm, 16), tm_cap))
    m_pad = _round_up(M, tm)
    grid_m = m_pad // tm

    if m_pad != M:
        x2d = jnp.pad(x2d, ((0, m_pad - M), (0, 0)))

    # Weights / biases / LN params: tiny, VMEM-resident (constant index_maps).
    we = params["we"].astype(compute_dtype)       # (din, emb)
    be = params["be"].astype(jnp.float32)         # (1, emb)
    wl = params["wl"].astype(compute_dtype)       # (n_loops, emb, emb)
    bl = params["bl"].astype(jnp.float32)         # (n_loops, 1, emb)
    g = params["gamma"].astype(jnp.float32)       # (1, emb)
    b = params["beta"].astype(jnp.float32)        # (1, emb)

    kernel = functools.partial(encoder_kernel, n_loops=n_loops, eps=LN_EPS)

    out = pl.pallas_call(
        kernel,
        out_shape=jax.ShapeDtypeStruct((m_pad, emb), jnp.float32),
        grid=(grid_m,),
        in_specs=[
            # Activations: streamed / pipelined per row-tile at natural width.
            pl.BlockSpec((tm, din), lambda i: (i, 0)),
            # Parameters: constant index_map -> stay resident, no per-step DMA.
            pl.BlockSpec((din, emb), lambda i: (0, 0)),
            pl.BlockSpec((1, emb), lambda i: (0, 0)),
            pl.BlockSpec((n_loops, emb, emb), lambda i: (0, 0, 0)),
            pl.BlockSpec((n_loops, 1, emb), lambda i: (0, 0, 0)),
            pl.BlockSpec((1, emb), lambda i: (0, 0)),
            pl.BlockSpec((1, emb), lambda i: (0, 0)),
        ],
        out_specs=pl.BlockSpec((tm, emb), lambda i: (i, 0)),
        compiler_params=pltpu.CompilerParams(
            dimension_semantics=("parallel",)),
    )(x2d, we, be, wl, bl, g, b)

    return out[:M].reshape(B, S, emb)


def init_params(key):
    k = jax.random.split(key, 4)
    # Weights stored pre-transposed as (in, out); biases as (1, out).
    we = jax.random.normal(k[0], (INPUT_DIM, EMB_DIM), jnp.float32) * 0.1
    be = jax.random.normal(k[1], (1, EMB_DIM), jnp.float32) * 0.1
    wl = jax.random.normal(k[2], (N_LOOPS, EMB_DIM, EMB_DIM), jnp.float32) * 0.1
    bl = jax.random.normal(k[3], (N_LOOPS, 1, EMB_DIM), jnp.float32) * 0.1
    gamma = jnp.ones((1, EMB_DIM), jnp.float32)
    beta = jnp.zeros((1, EMB_DIM), jnp.float32)
    return {"we": we, "be": be, "wl": wl, "bl": bl, "gamma": gamma, "beta": beta}


def reference_forward(x, params, compute_dtype=jnp.bfloat16):
    """Pure-JAX reference mirroring the kernel's precision choices."""
    B, S, din = x.shape
    h = jnp.dot(x.reshape(B * S, din).astype(compute_dtype),
                params["we"].astype(compute_dtype),
                preferred_element_type=jnp.float32) + params["be"][0]
    for i in range(N_LOOPS):
        h = jnp.dot(h.astype(compute_dtype),
                    params["wl"][i].astype(compute_dtype),
                    preferred_element_type=jnp.float32) + params["bl"][i, 0]
        h = jnp.maximum(h, 0.0)
    mean = jnp.mean(h, axis=-1, keepdims=True)
    var = jnp.mean((h - mean) ** 2, axis=-1, keepdims=True)
    out = (h - mean) * lax.rsqrt(var + LN_EPS) * params["gamma"][0] + params["beta"][0]
    return out.reshape(B, S, EMB_DIM)


if __name__ == "__main__":
    key = jax.random.PRNGKey(0)
    kx, kp = jax.random.split(key)
    x = jax.random.normal(kx, (BATCH, SEQ, INPUT_DIM), jnp.float32)
    params = init_params(kp)

    out = encoder_forward(x, params)   # toy M=16 -> tm clamps to 16
    out = jax.block_until_ready(out)

    ref = reference_forward(x, params)
    assert out.shape == (BATCH, SEQ, EMB_DIM)
    assert jnp.allclose(out, ref, atol=2e-3, rtol=2e-3), "mismatch vs reference"

    print("KERNEL_OK")
</pallas_src>

<mosaic_0001>
module attributes {stable_mosaic.version = 11 : i64} {
  func.func @encoder_kernel(%arg0: i32, %arg1: memref<16x16xf32, #tpu.memory_space<vmem>>, %arg2: memref<16x32xbf16, #tpu.memory_space<vmem>>, %arg3: memref<1x32xf32, #tpu.memory_space<vmem>>, %arg4: memref<2x32x32xbf16, #tpu.memory_space<vmem>>, %arg5: memref<2x1x32xf32, #tpu.memory_space<vmem>>, %arg6: memref<1x32xf32, #tpu.memory_space<vmem>>, %arg7: memref<1x32xf32, #tpu.memory_space<vmem>>, %arg8: memref<16x32xf32, #tpu.memory_space<vmem>>) attributes {dimension_semantics = [#tpu.dimension_semantics<parallel>], iteration_bounds = array<i64: 1>, scalar_prefetch = 0 : i64, scratch_operands = 0 : i64, tpu.core_type = #tpu.core_type<tc>, window_params = [{transform_indices = @transform_0, window_bounds = array<i64: 16, 16>}, {pipeline_mode = #tpu.pipeline_mode<synchronous>, transform_indices = @transform_1, window_bounds = array<i64: 16, 32>}, {pipeline_mode = #tpu.pipeline_mode<synchronous>, transform_indices = @transform_2, window_bounds = array<i64: 1, 32>}, {pipeline_mode = #tpu.pipeline_mode<synchronous>, transform_indices = @transform_3, window_bounds = array<i64: 2, 32, 32>}, {pipeline_mode = #tpu.pipeline_mode<synchronous>, transform_indices = @transform_4, window_bounds = array<i64: 2, 1, 32>}, {pipeline_mode = #tpu.pipeline_mode<synchronous>, transform_indices = @transform_5, window_bounds = array<i64: 1, 32>}, {pipeline_mode = #tpu.pipeline_mode<synchronous>, transform_indices = @transform_6, window_bounds = array<i64: 1, 32>}, {transform_indices = @transform_7, window_bounds = array<i64: 16, 32>}]} {
    %c0 = arith.constant 0 : index
    %c0_0 = arith.constant 0 : index
    %0 = vector.load %arg1[%c0, %c0_0] : memref<16x16xf32, #tpu.memory_space<vmem>>, vector<16x16xf32>
    %1 = arith.truncf %0 : vector<16x16xf32> to vector<16x16xbf16>
    %c0_1 = arith.constant 0 : index
    %c0_2 = arith.constant 0 : index
    %2 = vector.load %arg2[%c0_1, %c0_2] : memref<16x32xbf16, #tpu.memory_space<vmem>>, vector<16x32xbf16>
    %cst = arith.constant dense<0.000000e+00> : vector<16x32xf32>
    %3 = tpu.matmul %1, %2, %cst {dimension_numbers = #tpu.dot_dimension_numbers<[1], [0], [0], [1], [0, 0, 1, 1], [], []>} : vector<16x16xbf16>, vector<16x32xbf16>, vector<16x32xf32> -> vector<16x32xf32>
    %c0_3 = arith.constant 0 : index
    %c0_4 = arith.constant 0 : index
    %4 = vector.load %arg3[%c0_3, %c0_4] : memref<1x32xf32, #tpu.memory_space<vmem>>, vector<1x32xf32>
    %5 = vector.broadcast %4 : vector<1x32xf32> to vector<16x32xf32>
    %6 = arith.addf %3, %5 : vector<16x32xf32>
    %7 = arith.truncf %6 : vector<16x32xf32> to vector<16x32xbf16>
    %c0_5 = arith.constant 0 : index
    %c0_6 = arith.constant 0 : index
    %c0_7 = arith.constant 0 : index
    %8 = vector.load %arg4[%c0_5, %c0_6, %c0_7] : memref<2x32x32xbf16, #tpu.memory_space<vmem>>, vector<1x32x32xbf16>
    %9 = vector.shape_cast %8 : vector<1x32x32xbf16> to vector<32x32xbf16>
    %cst_8 = arith.constant dense<0.000000e+00> : vector<16x32xf32>
    %10 = tpu.matmul %7, %9, %cst_8 {dimension_numbers = #tpu.dot_dimension_numbers<[1], [0], [0], [1], [0, 0, 1, 1], [], []>} : vector<16x32xbf16>, vector<32x32xbf16>, vector<16x32xf32> -> vector<16x32xf32>
    %c0_9 = arith.constant 0 : index
    %c0_10 = arith.constant 0 : index
    %c0_11 = arith.constant 0 : index
    %11 = vector.load %arg5[%c0_9, %c0_10, %c0_11] : memref<2x1x32xf32, #tpu.memory_space<vmem>>, vector<1x1x32xf32>
    %12 = vector.shape_cast %11 : vector<1x1x32xf32> to vector<1x32xf32>
    %13 = vector.broadcast %12 : vector<1x32xf32> to vector<16x32xf32>
    %14 = arith.addf %10, %13 : vector<16x32xf32>
    %cst_12 = arith.constant 0.000000e+00 : f32
    %15 = vector.broadcast %cst_12 : f32 to vector<16x32xf32>
    %16 = arith.maximumf %14, %15 : vector<16x32xf32>
    %17 = arith.truncf %16 : vector<16x32xf32> to vector<16x32xbf16>
    %c1 = arith.constant 1 : index
    %c0_13 = arith.constant 0 : index
    %c0_14 = arith.constant 0 : index
    %18 = vector.load %arg4[%c1, %c0_13, %c0_14] : memref<2x32x32xbf16, #tpu.memory_space<vmem>>, vector<1x32x32xbf16>
    %19 = vector.shape_cast %18 : vector<1x32x32xbf16> to vector<32x32xbf16>
    %cst_15 = arith.constant dense<0.000000e+00> : vector<16x32xf32>
    %20 = tpu.matmul %17, %19, %cst_15 {dimension_numbers = #tpu.dot_dimension_numbers<[1], [0], [0], [1], [0, 0, 1, 1], [], []>} : vector<16x32xbf16>, vector<32x32xbf16>, vector<16x32xf32> -> vector<16x32xf32>
    %c1_16 = arith.constant 1 : index
    %c0_17 = arith.constant 0 : index
    %c0_18 = arith.constant 0 : index
    %21 = vector.load %arg5[%c1_16, %c0_17, %c0_18] : memref<2x1x32xf32, #tpu.memory_space<vmem>>, vector<1x1x32xf32>
    %22 = vector.shape_cast %21 : vector<1x1x32xf32> to vector<1x32xf32>
    %23 = vector.broadcast %22 : vector<1x32xf32> to vector<16x32xf32>
    %24 = arith.addf %20, %23 : vector<16x32xf32>
    %cst_19 = arith.constant 0.000000e+00 : f32
    %25 = vector.broadcast %cst_19 : f32 to vector<16x32xf32>
    %26 = arith.maximumf %24, %25 : vector<16x32xf32>
    %cst_20 = arith.constant dense<0.000000e+00> : vector<16xf32>
    %27 = vector.multi_reduction <add>, %26, %cst_20 [1] : vector<16x32xf32> to vector<16xf32>
    %28 = vector.shape_cast %27 : vector<16xf32> to vector<16x1xf32>
    %cst_21 = arith.constant 3.125000e-02 : f32
    %29 = vector.broadcast %cst_21 : f32 to vector<16x1xf32>
    %30 = arith.mulf %28, %29 : vector<16x1xf32>
    %31 = vector.broadcast %30 : vector<16x1xf32> to vector<16x32xf32>
    %32 = arith.subf %26, %31 : vector<16x32xf32>
    %33 = arith.mulf %32, %32 : vector<16x32xf32>
    %cst_22 = arith.constant dense<0.000000e+00> : vector<16xf32>
    %34 = vector.multi_reduction <add>, %33, %cst_22 [1] : vector<16x32xf32> to vector<16xf32>
    %35 = vector.shape_cast %34 : vector<16xf32> to vector<16x1xf32>
    %cst_23 = arith.constant 3.125000e-02 : f32
    %36 = vector.broadcast %cst_23 : f32 to vector<16x1xf32>
    %37 = arith.mulf %35, %36 : vector<16x1xf32>
    %cst_24 = arith.constant 9.99999974E-6 : f32
    %38 = vector.broadcast %cst_24 : f32 to vector<16x1xf32>
    %39 = arith.addf %37, %38 : vector<16x1xf32>
    %40 = math.rsqrt %39 : vector<16x1xf32>
    %41 = vector.broadcast %40 : vector<16x1xf32> to vector<16x32xf32>
    %42 = arith.mulf %32, %41 : vector<16x32xf32>
    %c0_25 = arith.constant 0 : index
    %c0_26 = arith.constant 0 : index
    %43 = vector.load %arg6[%c0_25, %c0_26] : memref<1x32xf32, #tpu.memory_space<vmem>>, vector<1x32xf32>
    %44 = vector.broadcast %43 : vector<1x32xf32> to vector<16x32xf32>
    %45 = arith.mulf %42, %44 : vector<16x32xf32>
    %c0_27 = arith.constant 0 : index
    %c0_28 = arith.constant 0 : index
    %46 = vector.load %arg7[%c0_27, %c0_28] : memref<1x32xf32, #tpu.memory_space<vmem>>, vector<1x32xf32>
    %47 = vector.broadcast %46 : vector<1x32xf32> to vector<16x32xf32>
    %48 = arith.addf %45, %47 : vector<16x32xf32>
    %c0_29 = arith.constant 0 : index
    %c0_30 = arith.constant 0 : index
    %49 = vector.load %arg8[%c0_29, %c0_30] : memref<16x32xf32, #tpu.memory_space<vmem>>, vector<16x32xf32>
    tpu.vector_store %arg8[%c0_29, %c0_30], %48 {strides = array<i32>} : memref<16x32xf32, #tpu.memory_space<vmem>>, vector<16x32xf32>,
    return
  }
  func.func @transform_0(%arg0: i32) -> (i32, i32) {
    %c0_i32 = arith.constant 0 : i32
    %c0_i32_0 = arith.constant 0 : i32
    return %arg0, %c0_i32 : i32, i32
  }
  func.func @transform_1(%arg0: i32) -> (i32, i32) {
    %c0_i32 = arith.constant 0 : i32
    %c0_i32_0 = arith.constant 0 : i32
    %c0_i32_1 = arith.constant 0 : i32
    return %c0_i32, %c0_i32_0 : i32, i32
  }
  func.func @transform_2(%arg0: i32) -> (i32, i32) {
    %c0_i32 = arith.constant 0 : i32
    %c0_i32_0 = arith.constant 0 : i32
    %c0_i32_1 = arith.constant 0 : i32
    return %c0_i32, %c0_i32_0 : i32, i32
  }
  func.func @transform_3(%arg0: i32) -> (i32, i32, i32) {
    %c0_i32 = arith.constant 0 : i32
    %c0_i32_0 = arith.constant 0 : i32
    %c0_i32_1 = arith.constant 0 : i32
    %c0_i32_2 = arith.constant 0 : i32
    return %c0_i32, %c0_i32_0, %c0_i32_1 : i32, i32, i32
  }
  func.func @transform_4(%arg0: i32) -> (i32, i32, i32) {
    %c0_i32 = arith.constant 0 : i32
    %c0_i32_0 = arith.constant 0 : i32
    %c0_i32_1 = arith.constant 0 : i32
    %c0_i32_2 = arith.constant 0 : i32
    return %c0_i32, %c0_i32_0, %c0_i32_1 : i32, i32, i32
  }
  func.func @transform_5(%arg0: i32) -> (i32, i32) {
    %c0_i32 = arith.constant 0 : i32
    %c0_i32_0 = arith.constant 0 : i32
    %c0_i32_1 = arith.constant 0 : i32
    return %c0_i32, %c0_i32_0 : i32, i32
  }
  func.func @transform_6(%arg0: i32) -> (i32, i32) {
    %c0_i32 = arith.constant 0 : i32
    %c0_i32_0 = arith.constant 0 : i32
    %c0_i32_1 = arith.constant 0 : i32
    return %c0_i32, %c0_i32_0 : i32, i32
  }
  func.func @transform_7(%arg0: i32) -> (i32, i32) {
    %c0_i32 = arith.constant 0 : i32
    %c0_i32_0 = arith.constant 0 : i32
    return %arg0, %c0_i32 : i32, i32
  }
}

</mosaic_0001>

<llo_original>
// kernel: tpu_custom_call.1
$region0: #{tpu_custom_call.1}
  #allocation0 [shape = 'u32[]', space=smem, size = 0x4, offset = 0x4, fixed_abs, tag = 'smem constant byte address 0x4 - core index']
  #allocation1 [shape = 'u32[144,128]{1,0:T(1,128)}', space=vmem, size = 0x12000, scoped, tag = 'internal scratch']
  %s0 = inlined_call_operand.hbm [shape: f32[16,16], index: 0, kind: input, shape index: {}]
  %s1 = inlined_call_operand.hbm [shape: bf16[16,32], index: 1, kind: input, shape index: {}]
  %s2 = inlined_call_operand.vmem [shape: f32[1,32], index: 2, kind: input, shape index: {}]
  %s3 = inlined_call_operand.hbm [shape: bf16[2,32,32], index: 3, kind: input, shape index: {}]
  %s4 = inlined_call_operand.vmem [shape: f32[2,1,32], index: 4, kind: input, shape index: {}]
  %s5 = inlined_call_operand.vmem [shape: f32[1,32], index: 5, kind: input, shape index: {}]
  %s6 = inlined_call_operand.vmem [shape: f32[1,32], index: 6, kind: input, shape index: {}]
  %s7 = inlined_call_operand.hbm [shape: f32[16,32], index: 7, kind: output, shape index: {}]
  %s8 = sld [smem:[#allocation0]]
  $region50: #{tpu_custom_call.1} parent=0
    _
  %s10 = ssub.s32 1, %s8
  %s11 = scalar_select 0, %s10, %s8
  $region1: #{tpu_custom_call.1} parent=0
    #allocation2 [shape = 'u8[8192]{0}', space=vmem, size = 0x2000, scoped, tag = 'input window, operand 0, single buffered']
    #allocation3 [shape = 's32[1]{0}', space=sflag, size = 0x4, scoped, tag = 'scoped memory for tpu_custom_call.1']
    #allocation4 [shape = 's32[1]{0}', space=sflag, size = 0x4, scoped, tag = 'scoped memory for tpu_custom_call.1']
    #allocation5 [shape = 'u8[4096]{0}', space=vmem, size = 0x1000, scoped, tag = 'input window, operand 1, single buffered']
    #allocation6 [shape = 's32[1]{0}', space=sflag, size = 0x4, scoped, tag = 'scoped memory for tpu_custom_call.1']
    #allocation7 [shape = 'u8[16384]{0}', space=vmem, size = 0x4000, scoped, tag = 'input window, operand 3, single buffered']
    #allocation8 [shape = 'u8[8192]{0}', space=vmem, size = 0x2000, scoped, tag = 'output window, operand 0, single buffered']
    %12 = vsyncpa [#allocation3], 0
    %13 = vsyncpa [#allocation6], 0
    %14 = vsyncpa [#allocation4], 0
    // Predicated region
    $region2: #{tpu_custom_call.1} parent=1 // pred_check
      _
    $region3: #{tpu_custom_call.1} parent=1 // pred_check_branch
      %16 = sbr.rel (0) target = $region5
    $region4: #{tpu_custom_call.1} parent=1 // pred_region
      %s18 = ssub.s32 256, 256
      %19 = vsyncadd [#allocation3], %s18
      %s20 = sshll.u32 [#allocation2], 4
      %s21 = int_to_ptr.vmem [resolvable:$true] %s20
      %26 = dma.hbm_to_vmem [thread:$0]  %s0, 256, %s21, [#allocation3], 128, 128, 8
    $region5: #{tpu_custom_call.1} parent=1 // pred_fallthru
      _
    // Predicated region
    $region6: #{tpu_custom_call.1} parent=1 // pred_check
      _
    $region7: #{tpu_custom_call.1} parent=1 // pred_check_branch
      %28 = sbr.rel (0) target = $region9
    $region8: #{tpu_custom_call.1} parent=1 // pred_region
      %s30 = ssub.s32 128, 128
      %31 = vsyncadd [#allocation6], %s30
      %s32 = sshll.u32 [#allocation5], 4
      %s33 = int_to_ptr.vmem [resolvable:$true] %s32
      %38 = dma.hbm_to_vmem [thread:$0]  %s1, 128, %s33, [#allocation6], 64, 64, 4
    $region9: #{tpu_custom_call.1} parent=1 // pred_fallthru
      _
    // Predicated region
    $region10: #{tpu_custom_call.1} parent=1 // pred_check
      _
    $region11: #{tpu_custom_call.1} parent=1 // pred_check_branch
      %40 = sbr.rel (0) target = $region13
    $region12: #{tpu_custom_call.1} parent=1 // pred_region
      _
    $region13: #{tpu_custom_call.1} parent=1 // pred_fallthru
      _
    // Predicated region
    $region14: #{tpu_custom_call.1} parent=1 // pred_check
      _
    $region15: #{tpu_custom_call.1} parent=1 // pred_check_branch
      %42 = sbr.rel (0) target = $region17
    $region16: #{tpu_custom_call.1} parent=1 // pred_region
      %s44 = ssub.s32 512, 512
      %45 = vsyncadd [#allocation6], %s44
      %s46 = sshll.u32 [#allocation7], 4
      %s47 = int_to_ptr.vmem [resolvable:$true] %s46
      %52 = dma.hbm_to_vmem [thread:$0]  %s3, 512, %s47, [#allocation6], 64, 64, 4
    $region17: #{tpu_custom_call.1} parent=1 // pred_fallthru
      _
    // Predicated region
    $region18: #{tpu_custom_call.1} parent=1 // pred_check
      _
    $region19: #{tpu_custom_call.1} parent=1 // pred_check_branch
      %54 = sbr.rel (0) target = $region21
    $region20: #{tpu_custom_call.1} parent=1 // pred_region
      _
    $region21: #{tpu_custom_call.1} parent=1 // pred_fallthru
      _
    // Predicated region
    $region22: #{tpu_custom_call.1} parent=1 // pred_check
      _
    $region23: #{tpu_custom_call.1} parent=1 // pred_check_branch
      %56 = sbr.rel (0) target = $region25
    $region24: #{tpu_custom_call.1} parent=1 // pred_region
      _
    $region25: #{tpu_custom_call.1} parent=1 // pred_fallthru
      _
    // Predicated region
    $region26: #{tpu_custom_call.1} parent=1 // pred_check
      _
    $region27: #{tpu_custom_call.1} parent=1 // pred_check_branch
      %58 = sbr.rel (0) target = $region29
    $region28: #{tpu_custom_call.1} parent=1 // pred_region
      _
    $region29: #{tpu_custom_call.1} parent=1 // pred_fallthru
      _
    // Predicated region
    $region30: #{tpu_custom_call.1} parent=1 // pred_check
      _
    $region31: #{tpu_custom_call.1} parent=1 // pred_check_branch
      %60 = sbr.rel (0) target = $region33
    $region32: #{tpu_custom_call.1} parent=1 // pred_region
      %61 = dma.done [#allocation3], 256
    $region33: #{tpu_custom_call.1} parent=1 // pred_fallthru
      _
    // Predicated region
    $region34: #{tpu_custom_call.1} parent=1 // pred_check
      _
    $region35: #{tpu_custom_call.1} parent=1 // pred_check_branch
      %63 = sbr.rel (0) target = $region37
    $region36: #{tpu_custom_call.1} parent=1 // pred_region
      %64 = dma.done [#allocation6], 128
    $region37: #{tpu_custom_call.1} parent=1 // pred_fallthru
      _
    // Predicated region
    $region38: #{tpu_custom_call.1} parent=1 // pred_check
      _
    $region39: #{tpu_custom_call.1} parent=1 // pred_check_branch
      %66 = sbr.rel (0) target = $region41
    $region40: #{tpu_custom_call.1} parent=1 // pred_region
      %67 = dma.done [#allocation6], 512
    $region41: #{tpu_custom_call.1} parent=1 // pred_fallthru
      _
    %v69 = vld [vmem:[#allocation2] sm:$0xff]
    %v70 = vld [vmem:[#allocation2 + $0x8] sm:$0xff]
    %v71 = vpack.c.bf16 %v70, %v69
    %v72 = vld [vmem:[#allocation5] sm:$0xf]
    %v73 = vld [vmem:[#allocation5 + $0x4] sm:$0xf]
    %v74 = vld [vmem:[%s2] sm:$0x1]
    %v76 = vlaneseq
    %v77 = vshrl.u32 %v76, 7
    %v78 = vsub.s32 0, %v77
    %v79 = vrot.slane %v74, %v78
    %v83 = vunpack.c.l.b16 %v72
    %v84 = vunpack.c.l.b16 %v73
    %v85 = vpack.c.b16 %v84, %v83
    %vm87 = vcmask 130048
    %v89 = vsel %vm87, %v71, 0
    %91 = vmatprep.subr.bf16.mxu0 0
    %92 = vmatpush1.bf16.msra.mxu0 0
    %93 = vmatprep.subr.bf16.mxu0 0
    %94 = vmatpush1.bf16.msra.mxu0 0
    %95 = vmatprep.subr.bf16.mxu0 0
    %96 = vmatpush1.bf16.msra.mxu0 0
    %97 = vmatprep.subr.bf16.mxu0 0
    %98 = vmatpush1.bf16.msra.mxu0 0
    %99 = vmatprep.subr.bf16.mxu0 0
    %100 = vmatpush1.bf16.msra.mxu0 0
    %101 = vmatprep.subr.bf16.mxu0 0
    %102 = vmatpush1.bf16.msra.mxu0 0
    %103 = vmatprep.subr.bf16.mxu0 0
    %104 = vmatpush1.bf16.msra.mxu0 0
    %105 = vmatprep.subr.bf16.mxu0 0
    %106 = vmatpush1.bf16.msra.mxu0 %v85
    %107 = vmatprep.subr.bf16.mxu0 0
    %108 = vmatpush2.bf16.msra.mxu0 0
    %109 = vmatprep.subr.bf16.mxu0 0
    %110 = vmatpush2.bf16.msra.mxu0 0
    %111 = vmatprep.subr.bf16.mxu0 0
    %112 = vmatpush2.bf16.msra.mxu0 0
    %113 = vmatprep.subr.bf16.mxu0 0
    %114 = vmatpush2.bf16.msra.mxu0 0
    %115 = vmatprep.subr.bf16.mxu0 0
    %116 = vmatpush2.bf16.msra.mxu0 0
    %117 = vmatprep.subr.bf16.mxu0 0
    %118 = vmatpush2.bf16.msra.mxu0 0
    %119 = vmatprep.subr.bf16.mxu0 0
    %120 = vmatpush2.bf16.msra.mxu0 0
    %121 = vmatprep.subr.bf16.mxu0 0
    %122 = vmatpush2.bf16.msra.mxu0 0
    %123 = vmatprep.mubr.bf16.mxu0 0
    %124 = vmatmul.mubr.bf16.gmra.mxu0 %v89
    %v125 = vpop.f32.mrf.mxu0
    %v126 = vadd.f32 %v79, %v125
    %v127 = vpop.f32.mrf.mxu0
    %v128 = vpop.f32.mrf.mxu0
    %v129 = vadd.f32 %v79, %v128
    %v130 = vpop.f32.mrf.mxu0
    %131 = vdwg.mxu0
    %v132 = vpack.c.bf16 %v129, %v126
    %v133 = vld [vmem:[#allocation7] sm:$0xf]
    %v134 = vld [vmem:[#allocation7 + $0x4] sm:$0xf]
    %v135 = vld [vmem:[#allocation7 + $0x8] sm:$0xf]
    %v136 = vld [vmem:[#allocation7 + $0xc] sm:$0xf]
    %v137 = vld [vmem:[%s4] sm:$0x1]
    %v139 = vlaneseq
    %v140 = vshrl.u32 %v139, 7
    %v141 = vsub.s32 0, %v140
    %v142 = vrot.slane %v137, %v141
    %v148 = vunpack.c.l.b16 %v133
    %v149 = vunpack.c.l.b16 %v134
    %v150 = vunpack.c.l.b16 %v135
    %v151 = vunpack.c.l.b16 %v136
    %v152 = vpack.c.b16 %v149, %v148
    %v153 = vpack.c.b16 %v151, %v150
    %vm156 = vcmask 261120
    %v158 = vsel %vm156, %v132, 0
    %160 = vmatprep.subr.bf16.mxu0 0
    %161 = vmatpush1.bf16.msra.mxu0 0
    %162 = vmatprep.subr.bf16.mxu0 0
    %163 = vmatpush1.bf16.msra.mxu0 0
    %164 = vmatprep.subr.bf16.mxu0 0
    %165 = vmatpush1.bf16.msra.mxu0 0
    %166 = vmatprep.subr.bf16.mxu0 0
    %167 = vmatpush1.bf16.msra.mxu0 0
    %168 = vmatprep.subr.bf16.mxu0 0
    %169 = vmatpush1.bf16.msra.mxu0 0
    %170 = vmatprep.subr.bf16.mxu0 0
    %171 = vmatpush1.bf16.msra.mxu0 0
    %172 = vmatprep.subr.bf16.mxu0 0
    %173 = vmatpush1.bf16.msra.mxu0 %v153
    %174 = vmatprep.subr.bf16.mxu0 0
    %175 = vmatpush1.bf16.msra.mxu0 %v152
    %176 = vmatprep.subr.bf16.mxu0 0
    %177 = vmatpush2.bf16.msra.mxu0 0
    %178 = vmatprep.subr.bf16.mxu0 0
    %179 = vmatpush2.bf16.msra.mxu0 0
    %180 = vmatprep.subr.bf16.mxu0 0
    %181 = vmatpush2.bf16.msra.mxu0 0
    %182 = vmatprep.subr.bf16.mxu0 0
    %183 = vmatpush2.bf16.msra.mxu0 0
    %184 = vmatprep.subr.bf16.mxu0 0
    %185 = vmatpush2.bf16.msra.mxu0 0
    %186 = vmatprep.subr.bf16.mxu0 0
    %187 = vmatpush2.bf16.msra.mxu0 0
    %188 = vmatprep.subr.bf16.mxu0 0
    %189 = vmatpush2.bf16.msra.mxu0 0
    %190 = vmatprep.subr.bf16.mxu0 0
    %191 = vmatpush2.bf16.msra.mxu0 0
    %192 = vmatprep.mubr.bf16.mxu0 0
    %193 = vmatmul.mubr.bf16.gmra.mxu0 %v158
    %v194 = vpop.f32.mrf.mxu0
    %v195 = vadd.f32 %v142, %v194
    %v196 = vpop.f32.mrf.mxu0
    %v197 = vpop.f32.mrf.mxu0
    %v198 = vadd.f32 %v142, %v197
    %v199 = vpop.f32.mrf.mxu0
    %200 = vdwg.mxu0
    %v201 = vmax.f32 %v195, 0.0
    %v202 = vmax.f32 %v198, 0.0
    %v203 = vpack.c.bf16 %v202, %v201
    %s204 = scalar_lea.vmem [#allocation7], 16
    %v205 = vld [vmem:[%s204] sm:$0xf]
    %v206 = vld [vmem:[%s204 + $0x4] sm:$0xf]
    %v207 = vld [vmem:[%s204 + $0x8] sm:$0xf]
    %v208 = vld [vmem:[%s204 + $0xc] sm:$0xf]
    %s209 = scalar_lea.vmem %s4, 1
    %v210 = vld [vmem:[%s209] sm:$0x1]
    %v212 = vlaneseq
    %v213 = vshrl.u32 %v212, 7
    %v214 = vsub.s32 0, %v213
    %v215 = vrot.slane %v210, %v214
    %v221 = vunpack.c.l.b16 %v205
    %v222 = vunpack.c.l.b16 %v206
    %v223 = vunpack.c.l.b16 %v207
    %v224 = vunpack.c.l.b16 %v208
    %v225 = vpack.c.b16 %v222, %v221
    %v226 = vpack.c.b16 %v224, %v223
    %v230 = vsel %vm156, %v203, 0
    %232 = vmatprep.subr.bf16.mxu0 0
    %233 = vmatpush1.bf16.msra.mxu0 0
    %234 = vmatprep.subr.bf16.mxu0 0
    %235 = vmatpush1.bf16.msra.mxu0 0
    %236 = vmatprep.subr.bf16.mxu0 0
    %237 = vmatpush1.bf16.msra.mxu0 0
    %238 = vmatprep.subr.bf16.mxu0 0
    %239 = vmatpush1.bf16.msra.mxu0 0
    %240 = vmatprep.subr.bf16.mxu0 0
    %241 = vmatpush1.bf16.msra.mxu0 0
    %242 = vmatprep.subr.bf16.mxu0 0
    %243 = vmatpush1.bf16.msra.mxu0 0
    %244 = vmatprep.subr.bf16.mxu0 0
    %245 = vmatpush1.bf16.msra.mxu0 %v226
    %246 = vmatprep.subr.bf16.mxu0 0
    %247 = vmatpush1.bf16.msra.mxu0 %v225
    %248 = vmatprep.subr.bf16.mxu0 0
    %249 = vmatpush2.bf16.msra.mxu0 0
    %250 = vmatprep.subr.bf16.mxu0 0
    %251 = vmatpush2.bf16.msra.mxu0 0
    %252 = vmatprep.subr.bf16.mxu0 0
    %253 = vmatpush2.bf16.msra.mxu0 0
    %254 = vmatprep.subr.bf16.mxu0 0
    %255 = vmatpush2.bf16.msra.mxu0 0
    %256 = vmatprep.subr.bf16.mxu0 0
    %257 = vmatpush2.bf16.msra.mxu0 0
    %258 = vmatprep.subr.bf16.mxu0 0
    %259 = vmatpush2.bf16.msra.mxu0 0
    %260 = vmatprep.subr.bf16.mxu0 0
    %261 = vmatpush2.bf16.msra.mxu0 0
    %262 = vmatprep.subr.bf16.mxu0 0
    %263 = vmatpush2.bf16.msra.mxu0 0
    %264 = vmatprep.mubr.bf16.mxu0 0
    %265 = vmatmul.mubr.bf16.gmra.mxu0 %v230
    %v266 = vpop.f32.mrf.mxu0
    %v267 = vadd.f32 %v215, %v266
    %v268 = vpop.f32.mrf.mxu0
    %v269 = vpop.f32.mrf.mxu0
    %v270 = vadd.f32 %v215, %v269
    %v271 = vpop.f32.mrf.mxu0
    %272 = vdwg.mxu0
    %v273 = vmax.f32 %v267, 0.0
    %v274 = vmax.f32 %v270, 0.0
    %v275 = vsel %vm156, %v273, 0.0
    %276 = vadd.xlane.f32.xlu0 %v275
    %v277 = vpop.xlane.xlu0 %276
    %v278 = vsel %vm156, %v274, 0.0
    %279 = vadd.xlane.f32.xlu0 %v278
    %v280 = vpop.xlane.xlu0 %279
    %v281 = vmul.f32 %v277, 0.03125
    %v282 = vmul.f32 %v280, 0.03125
    %v283 = vsub.f32 %v273, %v281
    %v284 = vsub.f32 %v274, %v282
    %v285 = vmul.f32 %v283, %v283
    %v286 = vmul.f32 %v284, %v284
    %v287 = vsel %vm156, %v285, 0.0
    %288 = vadd.xlane.f32.xlu0 %v287
    %v289 = vpop.xlane.xlu0 %288
    %v290 = vsel %vm156, %v286, 0.0
    %291 = vadd.xlane.f32.xlu0 %v290
    %v292 = vpop.xlane.xlu0 %291
    %v293 = vmul.f32 %v289, 0.03125
    %v294 = vmul.f32 %v292, 0.03125
    %v295 = vadd.f32 %v293, 1e-05
    %v296 = vadd.f32 %v294, 1e-05
    %v297 = vrsqrt.pop %v295
    %v298 = vrsqrt.pop %v296
    %v299 = vmul.f32 %v283, %v297
    %v300 = vmul.f32 %v284, %v298
    %v301 = vld [vmem:[%s5] sm:$0x1]
    %v303 = vlaneseq
    %v304 = vshrl.u32 %v303, 7
    %v305 = vsub.s32 0, %v304
    %v306 = vrot.slane %v301, %v305
    %v308 = vmul.f32 %v299, %v306
    %v309 = vmul.f32 %v300, %v306
    %v310 = vld [vmem:[%s6] sm:$0x1]
    %v312 = vlaneseq
    %v313 = vshrl.u32 %v312, 7
    %v314 = vsub.s32 0, %v313
    %v315 = vrot.slane %v310, %v314
    %v317 = vadd.f32 %v308, %v315
    %v318 = vadd.f32 %v309, %v315
    %319 = vst.msk [vmem:[#allocation8] sm:$0xff] %vm156, %v317
    %320 = vst.msk [vmem:[#allocation8 + $0x8] sm:$0xff] %vm156, %v318
    // Predicated region
    $region42: #{tpu_custom_call.1} parent=1 // pred_check
      _
    $region43: #{tpu_custom_call.1} parent=1 // pred_check_branch
      %322 = sbr.rel (0) target = $region45
    $region44: #{tpu_custom_call.1} parent=1 // pred_region
      %s324 = ssub.s32 256, 256
      %325 = vsyncadd [#allocation4], %s324
      %s326 = sshll.u32 [#allocation8], 4
      %s327 = int_to_ptr.vmem [resolvable:$true] %s326
      %332 = dma.vmem_to_hbm [thread:$0]  %s327, 256, %s7, [#allocation4], 128, 128, 8
    $region45: #{tpu_custom_call.1} parent=1 // pred_fallthru
      _
    // Predicated region
    $region46: #{tpu_custom_call.1} parent=1 // pred_check
      _
    $region47: #{tpu_custom_call.1} parent=1 // pred_check_branch
      %334 = sbr.rel (0) target = $region49
    $region48: #{tpu_custom_call.1} parent=1 // pred_region
      %335 = dma.done [#allocation4], 256
    $region49: #{tpu_custom_call.1} parent=1 // pred_fallthru
      _
    %336 = vsyncpa [#allocation3], 1
    %337 = vsyncpa [#allocation6], 1
    %338 = vsyncpa [#allocation4], 1

</llo_original>
